<compile_context>
chip_gen: v5e
topology: v5e:2x2
jax: 0.10.0
libtpu: 0.0.40
codegen_flags: <defaults>
</compile_context>

<pallas_src>
import functools

import jax
import jax.numpy as jnp
from jax.experimental import pallas as pl
from jax.experimental.pallas import tpu as pltpu

N_NEURONES = 32
N_LAYER = 3                 # fc1 + (N_LAYER - 1) * fcX (shared) + fc2
IN_FEATURES = 28 * 28
OUT_CLASSES = 10

HIDDEN_PAD = 128            # lane-dense hidden width
OUT_PAD = 128               # lane-dense output width (sliced to 10 outside)
TILE_B_MAX = 2048           # f32 x tile @2048 rows ~6.3 MiB; double-buffered
                            # x + out + resident weights ~16 MiB, well under
                            # the 32 MiB default scoped VMEM (v7x-safe).
MIN_SPLIT_BATCH = 16        # below this a single tile is fine
NEG_INF = -1e30


def _round_up(n, m):
    return (n + m - 1) // m * m


def _use_bf16_act():
    """bf16 tanh only on chips with a bf16 EUP (v6e / v7x); f32 elsewhere."""
    try:
        kind = jax.devices()[0].device_kind.lower()
    except Exception:
        return False
    return ("v6" in kind) or ("v7" in kind)


def _choose_tiling(batch):
    """Balanced batch tiling: no padding cliff, >=2 (even) tiles when the
    batch is big enough so the 'parallel' axis can shard across v7x cores."""
    n_tiles = pl.cdiv(batch, TILE_B_MAX)
    if batch >= MIN_SPLIT_BATCH:
        n_tiles = max(n_tiles, 2)
    if n_tiles > 1 and n_tiles % 2:
        n_tiles += 1
    tile_b = _round_up(pl.cdiv(batch, n_tiles), 8)
    b_pad = _round_up(batch, tile_b)
    return tile_b, b_pad


def _mlp_kernel(x_ref, w1_ref, b1_ref, wx_ref, bx_ref, w2_ref, b2_ref,
                out_ref, *, n_layer, bf16_act):
    # x_ref: (TILE_B, 784) f32; w*_ref: (in, out) bf16; b*_ref: (1, out) f32
    x = x_ref[...].astype(jnp.bfloat16)        # cast hides under the x DMA
    b1 = b1_ref[...]
    bx = bx_ref[...]
    b2 = b2_ref[...]                           # padded classes carry -1e30

    act_dtype = jnp.bfloat16 if bf16_act else jnp.float32

    # fc1 + tanh (bf16 MXU matmul, f32 accumulate)
    h = jnp.dot(x, w1_ref[...], preferred_element_type=jnp.float32) + b1
    h = jnp.tanh(h.astype(act_dtype)).astype(jnp.bfloat16)

    # (n_layer - 1) applications of the *shared* fcX layer + tanh
    # (static Python unroll: n_layer is a compile-time constant)
    for _ in range(n_layer - 1):
        h = jnp.dot(h, wx_ref[...], preferred_element_type=jnp.float32) + bx
        h = jnp.tanh(h.astype(act_dtype)).astype(jnp.bfloat16)

    # fc2; padded logit columns arrive at -1e30 straight from the bias add
    # (w2 padded columns are zero), so no in-kernel masking is needed.
    logits = jnp.dot(h, w2_ref[...], preferred_element_type=jnp.float32) + b2

    m = jnp.max(logits, axis=1, keepdims=True)
    shifted = logits - m
    lse = jnp.log(jnp.sum(jnp.exp(shifted), axis=1, keepdims=True))
    out_ref[...] = (shifted - lse).astype(out_ref.dtype)


def prepare_params(params, n_neurones=N_NEURONES):
    """One-time prep: transpose to (in, out), zero-pad to lane-dense widths,
    cast MXU-facing weights to bf16, bake the padded-class mask into b2."""
    w1, b1, wx, bx, w2, b2 = params            # PyTorch layout: (out, in), (out,)
    H, C = HIDDEN_PAD, OUT_PAD
    w1t = jnp.zeros((IN_FEATURES, H), jnp.float32).at[:, :n_neurones].set(w1.T)
    wxt = jnp.zeros((H, H), jnp.float32).at[:n_neurones, :n_neurones].set(wx.T)
    w2t = jnp.zeros((H, C), jnp.float32).at[:n_neurones, :OUT_CLASSES].set(w2.T)
    b1p = jnp.zeros((1, H), jnp.float32).at[0, :n_neurones].set(b1)
    bxp = jnp.zeros((1, H), jnp.float32).at[0, :n_neurones].set(bx)
    b2p = jnp.full((1, C), NEG_INF, jnp.float32).at[0, :OUT_CLASSES].set(b2)
    return (w1t.astype(jnp.bfloat16), b1p,
            wxt.astype(jnp.bfloat16), bxp,
            w2t.astype(jnp.bfloat16), b2p)


@functools.partial(jax.jit, static_argnames=("n_layer", "bf16_act"))
def _forward(image, prepared_params, *, n_layer, bf16_act):
    w1t, b1p, wxt, bxp, w2t, b2p = prepared_params
    batch = image.shape[0]

    # flatten NCHW row-major, exactly like torch .view(batch, -1); keep f32
    x = image.reshape(batch, -1).astype(jnp.float32)

    tile_b, b_pad = _choose_tiling(batch)
    if b_pad != batch:
        x = jnp.pad(x, ((0, b_pad - batch), (0, 0)))   # cheap row-only pad

    grid = (b_pad // tile_b,)
    resident = lambda a: pl.BlockSpec(a.shape, lambda i: (0,) * a.ndim)

    flops = 2 * b_pad * (IN_FEATURES * HIDDEN_PAD
                         + (n_layer - 1) * HIDDEN_PAD * HIDDEN_PAD
                         + HIDDEN_PAD * OUT_PAD)
    transcendentals = b_pad * (n_layer * HIDDEN_PAD + OUT_PAD)
    bytes_accessed = (b_pad * IN_FEATURES * 4            # x (f32 in)
                      + b_pad * OUT_PAD * 4              # out (f32)
                      + 2 * (IN_FEATURES * HIDDEN_PAD    # bf16 weights
                             + HIDDEN_PAD * HIDDEN_PAD
                             + HIDDEN_PAD * OUT_PAD)
                      + 4 * (2 * HIDDEN_PAD + OUT_PAD))  # f32 biases

    out = pl.pallas_call(
        functools.partial(_mlp_kernel, n_layer=n_layer, bf16_act=bf16_act),
        out_shape=jax.ShapeDtypeStruct((b_pad, OUT_PAD), jnp.float32),
        grid=grid,
        in_specs=[
            pl.BlockSpec((tile_b, IN_FEATURES), lambda i: (i, 0)),  # x tile
            resident(w1t), resident(b1p),
            resident(wxt), resident(bxp),
            resident(w2t), resident(b2p),
        ],
        out_specs=pl.BlockSpec((tile_b, OUT_PAD), lambda i: (i, 0)),
        compiler_params=pltpu.CompilerParams(
            dimension_semantics=("parallel",)),
        cost_estimate=pl.CostEstimate(
            flops=flops, transcendentals=transcendentals,
            bytes_accessed=bytes_accessed),
    )(x, w1t, b1p, wxt, bxp, w2t, b2p)

    return out[:batch, :OUT_CLASSES]


def n_layer_tanh_forward(image, prepared_params, n_layer=N_LAYER):
    """image: (B, 1, 28, 28) float32 -> (B, 10) log-probabilities.

    `prepared_params` must come from prepare_params() (called once, outside
    the hot path)."""
    return _forward(image, prepared_params, n_layer=n_layer,
                    bf16_act=_use_bf16_act())


def init_params(key, n_neurones=N_NEURONES):
    """Deterministic PyTorch-Linear-style init (uniform(-1/sqrt(fan_in), ...))."""
    ks = jax.random.split(key, 6)

    def linear(kw, kb, out_f, in_f):
        bound = 1.0 / jnp.sqrt(in_f)
        w = jax.random.uniform(kw, (out_f, in_f), jnp.float32, -bound, bound)
        b = jax.random.uniform(kb, (out_f,), jnp.float32, -bound, bound)
        return w, b

    w1, b1 = linear(ks[0], ks[1], n_neurones, IN_FEATURES)
    wx, bx = linear(ks[2], ks[3], n_neurones, n_neurones)
    w2, b2 = linear(ks[4], ks[5], OUT_CLASSES, n_neurones)
    return (w1, b1, wx, bx, w2, b2)


if __name__ == "__main__":
    key = jax.random.PRNGKey(0)
    k_img, k_par = jax.random.split(key)

    batch = 2
    image = jax.random.normal(k_img, (batch, 1, 28, 28), jnp.float32)
    params = init_params(k_par)
    prepared = prepare_params(params)          # one-time weight prep

    out = n_layer_tanh_forward(image, prepared)
    jax.block_until_ready(out)

    # sanity: log_softmax rows should (approximately) exp-sum to 1
    row_sums = jnp.sum(jnp.exp(out), axis=1)
    assert out.shape == (batch, OUT_CLASSES)
    assert bool(jnp.all(jnp.abs(row_sums - 1.0) < 1e-2))

    print("KERNEL_OK")
</pallas_src>

<mosaic_0001>
module attributes {stable_mosaic.version = 11 : i64} {
  func.func @_mlp_kernel(%arg0: i32, %arg1: memref<8x784xf32, #tpu.memory_space<vmem>>, %arg2: memref<784x128xbf16, #tpu.memory_space<vmem>>, %arg3: memref<1x128xf32, #tpu.memory_space<vmem>>, %arg4: memref<128x128xbf16, #tpu.memory_space<vmem>>, %arg5: memref<1x128xf32, #tpu.memory_space<vmem>>, %arg6: memref<128x128xbf16, #tpu.memory_space<vmem>>, %arg7: memref<1x128xf32, #tpu.memory_space<vmem>>, %arg8: memref<8x128xf32, #tpu.memory_space<vmem>>) attributes {dimension_semantics = [#tpu.dimension_semantics<parallel>], iteration_bounds = array<i64: 1>, scalar_prefetch = 0 : i64, scratch_operands = 0 : i64, tpu.core_type = #tpu.core_type<tc>, window_params = [{transform_indices = @transform_0, window_bounds = array<i64: 8, 784>}, {pipeline_mode = #tpu.pipeline_mode<synchronous>, transform_indices = @transform_1, window_bounds = array<i64: 784, 128>}, {pipeline_mode = #tpu.pipeline_mode<synchronous>, transform_indices = @transform_2, window_bounds = array<i64: 1, 128>}, {pipeline_mode = #tpu.pipeline_mode<synchronous>, transform_indices = @transform_3, window_bounds = array<i64: 128, 128>}, {pipeline_mode = #tpu.pipeline_mode<synchronous>, transform_indices = @transform_4, window_bounds = array<i64: 1, 128>}, {pipeline_mode = #tpu.pipeline_mode<synchronous>, transform_indices = @transform_5, window_bounds = array<i64: 128, 128>}, {pipeline_mode = #tpu.pipeline_mode<synchronous>, transform_indices = @transform_6, window_bounds = array<i64: 1, 128>}, {transform_indices = @transform_7, window_bounds = array<i64: 8, 128>}]} {
    %c0 = arith.constant 0 : index
    %c0_0 = arith.constant 0 : index
    %0 = vector.load %arg1[%c0, %c0_0] : memref<8x784xf32, #tpu.memory_space<vmem>>, vector<8x784xf32>
    %1 = arith.truncf %0 : vector<8x784xf32> to vector<8x784xbf16>
    %c0_1 = arith.constant 0 : index
    %c0_2 = arith.constant 0 : index
    %2 = vector.load %arg3[%c0_1, %c0_2] : memref<1x128xf32, #tpu.memory_space<vmem>>, vector<1x128xf32>
    %c0_3 = arith.constant 0 : index
    %c0_4 = arith.constant 0 : index
    %3 = vector.load %arg5[%c0_3, %c0_4] : memref<1x128xf32, #tpu.memory_space<vmem>>, vector<1x128xf32>
    %c0_5 = arith.constant 0 : index
    %c0_6 = arith.constant 0 : index
    %4 = vector.load %arg7[%c0_5, %c0_6] : memref<1x128xf32, #tpu.memory_space<vmem>>, vector<1x128xf32>
    %c0_7 = arith.constant 0 : index
    %c0_8 = arith.constant 0 : index
    %5 = vector.load %arg2[%c0_7, %c0_8] : memref<784x128xbf16, #tpu.memory_space<vmem>>, vector<784x128xbf16>
    %cst = arith.constant dense<0.000000e+00> : vector<8x128xf32>
    %6 = tpu.matmul %1, %5, %cst {dimension_numbers = #tpu.dot_dimension_numbers<[1], [0], [0], [1], [0, 0, 1, 1], [], []>} : vector<8x784xbf16>, vector<784x128xbf16>, vector<8x128xf32> -> vector<8x128xf32>
    %7 = vector.broadcast %2 : vector<1x128xf32> to vector<8x128xf32>
    %8 = arith.addf %6, %7 : vector<8x128xf32>
    %9 = math.tanh %8 : vector<8x128xf32>
    %10 = arith.truncf %9 : vector<8x128xf32> to vector<8x128xbf16>
    %c0_9 = arith.constant 0 : index
    %c0_10 = arith.constant 0 : index
    %11 = vector.load %arg4[%c0_9, %c0_10] : memref<128x128xbf16, #tpu.memory_space<vmem>>, vector<128x128xbf16>
    %cst_11 = arith.constant dense<0.000000e+00> : vector<8x128xf32>
    %12 = tpu.matmul %10, %11, %cst_11 {dimension_numbers = #tpu.dot_dimension_numbers<[1], [0], [0], [1], [0, 0, 1, 1], [], []>} : vector<8x128xbf16>, vector<128x128xbf16>, vector<8x128xf32> -> vector<8x128xf32>
    %13 = vector.broadcast %3 : vector<1x128xf32> to vector<8x128xf32>
    %14 = arith.addf %12, %13 : vector<8x128xf32>
    %15 = math.tanh %14 : vector<8x128xf32>
    %16 = arith.truncf %15 : vector<8x128xf32> to vector<8x128xbf16>
    %c0_12 = arith.constant 0 : index
    %c0_13 = arith.constant 0 : index
    %17 = vector.load %arg4[%c0_12, %c0_13] : memref<128x128xbf16, #tpu.memory_space<vmem>>, vector<128x128xbf16>
    %cst_14 = arith.constant dense<0.000000e+00> : vector<8x128xf32>
    %18 = tpu.matmul %16, %17, %cst_14 {dimension_numbers = #tpu.dot_dimension_numbers<[1], [0], [0], [1], [0, 0, 1, 1], [], []>} : vector<8x128xbf16>, vector<128x128xbf16>, vector<8x128xf32> -> vector<8x128xf32>
    %19 = vector.broadcast %3 : vector<1x128xf32> to vector<8x128xf32>
    %20 = arith.addf %18, %19 : vector<8x128xf32>
    %21 = math.tanh %20 : vector<8x128xf32>
    %22 = arith.truncf %21 : vector<8x128xf32> to vector<8x128xbf16>
    %c0_15 = arith.constant 0 : index
    %c0_16 = arith.constant 0 : index
    %23 = vector.load %arg6[%c0_15, %c0_16] : memref<128x128xbf16, #tpu.memory_space<vmem>>, vector<128x128xbf16>
    %cst_17 = arith.constant dense<0.000000e+00> : vector<8x128xf32>
    %24 = tpu.matmul %22, %23, %cst_17 {dimension_numbers = #tpu.dot_dimension_numbers<[1], [0], [0], [1], [0, 0, 1, 1], [], []>} : vector<8x128xbf16>, vector<128x128xbf16>, vector<8x128xf32> -> vector<8x128xf32>
    %25 = vector.broadcast %4 : vector<1x128xf32> to vector<8x128xf32>
    %26 = arith.addf %24, %25 : vector<8x128xf32>
    %cst_18 = arith.constant dense<0xFF800000> : vector<8xf32>
    %27 = vector.multi_reduction <maximumf>, %26, %cst_18 [1] : vector<8x128xf32> to vector<8xf32>
    %28 = vector.shape_cast %27 : vector<8xf32> to vector<8x1xf32>
    %29 = vector.broadcast %28 : vector<8x1xf32> to vector<8x128xf32>
    %30 = arith.subf %26, %29 : vector<8x128xf32>
    %31 = math.exp %30 : vector<8x128xf32>
    %cst_19 = arith.constant dense<0.000000e+00> : vector<8xf32>
    %32 = vector.multi_reduction <add>, %31, %cst_19 [1] : vector<8x128xf32> to vector<8xf32>
    %33 = vector.shape_cast %32 : vector<8xf32> to vector<8x1xf32>
    %34 = math.log %33 : vector<8x1xf32>
    %35 = vector.broadcast %34 : vector<8x1xf32> to vector<8x128xf32>
    %36 = arith.subf %30, %35 : vector<8x128xf32>
    %c0_20 = arith.constant 0 : index
    %c0_21 = arith.constant 0 : index
    %37 = vector.load %arg8[%c0_20, %c0_21] : memref<8x128xf32, #tpu.memory_space<vmem>>, vector<8x128xf32>
    tpu.vector_store %arg8[%c0_20, %c0_21], %36 {strides = array<i32>} : memref<8x128xf32, #tpu.memory_space<vmem>>, vector<8x128xf32>,
    return
  }
  func.func @transform_0(%arg0: i32) -> (i32, i32) {
    %c0_i32 = arith.constant 0 : i32
    %c0_i32_0 = arith.constant 0 : i32
    return %arg0, %c0_i32 : i32, i32
  }
  func.func @transform_1(%arg0: i32) -> (i32, i32) {
    %c0_i32 = arith.constant 0 : i32
    %c0_i32_0 = arith.constant 0 : i32
    %c0_i32_1 = arith.constant 0 : i32
    return %c0_i32, %c0_i32_0 : i32, i32
  }
  func.func @transform_2(%arg0: i32) -> (i32, i32) {
    %c0_i32 = arith.constant 0 : i32
    %c0_i32_0 = arith.constant 0 : i32
    %c0_i32_1 = arith.constant 0 : i32
    return %c0_i32, %c0_i32_0 : i32, i32
  }
  func.func @transform_3(%arg0: i32) -> (i32, i32) {
    %c0_i32 = arith.constant 0 : i32
    %c0_i32_0 = arith.constant 0 : i32
    %c0_i32_1 = arith.constant 0 : i32
    return %c0_i32, %c0_i32_0 : i32, i32
  }
  func.func @transform_4(%arg0: i32) -> (i32, i32) {
    %c0_i32 = arith.constant 0 : i32
    %c0_i32_0 = arith.constant 0 : i32
    %c0_i32_1 = arith.constant 0 : i32
    return %c0_i32, %c0_i32_0 : i32, i32
  }
  func.func @transform_5(%arg0: i32) -> (i32, i32) {
    %c0_i32 = arith.constant 0 : i32
    %c0_i32_0 = arith.constant 0 : i32
    %c0_i32_1 = arith.constant 0 : i32
    return %c0_i32, %c0_i32_0 : i32, i32
  }
  func.func @transform_6(%arg0: i32) -> (i32, i32) {
    %c0_i32 = arith.constant 0 : i32
    %c0_i32_0 = arith.constant 0 : i32
    %c0_i32_1 = arith.constant 0 : i32
    return %c0_i32, %c0_i32_0 : i32, i32
  }
  func.func @transform_7(%arg0: i32) -> (i32, i32) {
    %c0_i32 = arith.constant 0 : i32
    %c0_i32_0 = arith.constant 0 : i32
    return %arg0, %c0_i32 : i32, i32
  }
}

</mosaic_0001>

<llo_original>
// kernel: _forward.1
$region0: #{_forward.1}
  #allocation0 [shape = 'u32[]', space=smem, size = 0x4, offset = 0x4, fixed_abs, tag = 'smem constant byte address 0x4 - core index']
  #allocation1 [shape = 'u32[72,128]{1,0:T(1,128)}', space=vmem, size = 0x9000, scoped, tag = 'internal scratch']
  %s0 = inlined_call_operand.vmem [shape: f32[8,784], index: 0, kind: input, shape index: {}]
  %s1 = inlined_call_operand.hbm [shape: bf16[784,128], index: 1, kind: input, shape index: {}]
  %s2 = inlined_call_operand.vmem [shape: f32[1,128], index: 2, kind: input, shape index: {}]
  %s3 = inlined_call_operand.vmem [shape: bf16[128,128], index: 3, kind: input, shape index: {}]
  %s4 = inlined_call_operand.vmem [shape: f32[1,128], index: 4, kind: input, shape index: {}]
  %s5 = inlined_call_operand.vmem [shape: bf16[128,128], index: 5, kind: input, shape index: {}]
  %s6 = inlined_call_operand.vmem [shape: f32[1,128], index: 6, kind: input, shape index: {}]
  %s7 = inlined_call_operand.vmem [shape: f32[8,128], index: 7, kind: output, shape index: {}]
  %s8 = sld [smem:[#allocation0]]
  $region42: #{_forward.1} parent=0
    _
  %s10 = ssub.s32 1, %s8
  %s11 = scalar_select 0, %s10, %s8
  $region1: #{_forward.1} parent=0
    #allocation2 [shape = 'u8[200704]{0}', space=vmem, size = 0x31000, scoped, tag = 'input window, operand 1, single buffered']
    #allocation3 [shape = 's32[1]{0}', space=sflag, size = 0x4, scoped, tag = 'scoped memory for _forward.1']
    %12 = vsyncpa [#allocation3], 0
    // Predicated region
    $region2: #{_forward.1} parent=1 // pred_check
      _
    $region3: #{_forward.1} parent=1 // pred_check_branch
      %14 = sbr.rel (0) target = $region5
    $region4: #{_forward.1} parent=1 // pred_region
      _
    $region5: #{_forward.1} parent=1 // pred_fallthru
      _
    // Predicated region
    $region6: #{_forward.1} parent=1 // pred_check
      _
    $region7: #{_forward.1} parent=1 // pred_check_branch
      %16 = sbr.rel (0) target = $region9
    $region8: #{_forward.1} parent=1 // pred_region
      %18 = vsyncadd [#allocation3], 0
      %s19 = sshll.u32 %s1, 4
      %s20 = int_to_ptr.hbm [resolvable:$true] %s19
      %s21 = sshll.u32 [#allocation2], 4
      %s22 = int_to_ptr.vmem [resolvable:$true] %s21
      %27 = dma.hbm_to_vmem [thread:$0]  %s20, 6272, %s22, [#allocation3], 64, 64, 4
    $region9: #{_forward.1} parent=1 // pred_fallthru
      _
    // Predicated region
    $region10: #{_forward.1} parent=1 // pred_check
      _
    $region11: #{_forward.1} parent=1 // pred_check_branch
      %29 = sbr.rel (0) target = $region13
    $region12: #{_forward.1} parent=1 // pred_region
      _
    $region13: #{_forward.1} parent=1 // pred_fallthru
      _
    // Predicated region
    $region14: #{_forward.1} parent=1 // pred_check
      _
    $region15: #{_forward.1} parent=1 // pred_check_branch
      %31 = sbr.rel (0) target = $region17
    $region16: #{_forward.1} parent=1 // pred_region
      _
    $region17: #{_forward.1} parent=1 // pred_fallthru
      _
    // Predicated region
    $region18: #{_forward.1} parent=1 // pred_check
      _
    $region19: #{_forward.1} parent=1 // pred_check_branch
      %33 = sbr.rel (0) target = $region21
    $region20: #{_forward.1} parent=1 // pred_region
      _
    $region21: #{_forward.1} parent=1 // pred_fallthru
      _
    // Predicated region
    $region22: #{_forward.1} parent=1 // pred_check
      _
    $region23: #{_forward.1} parent=1 // pred_check_branch
      %35 = sbr.rel (0) target = $region25
    $region24: #{_forward.1} parent=1 // pred_region
      _
    $region25: #{_forward.1} parent=1 // pred_fallthru
      _
    // Predicated region
    $region26: #{_forward.1} parent=1 // pred_check
      _
    $region27: #{_forward.1} parent=1 // pred_check_branch
      %37 = sbr.rel (0) target = $region29
    $region28: #{_forward.1} parent=1 // pred_region
      _
    $region29: #{_forward.1} parent=1 // pred_fallthru
      _
    // Predicated region
    $region30: #{_forward.1} parent=1 // pred_check
      _
    $region31: #{_forward.1} parent=1 // pred_check_branch
      %39 = sbr.rel (0) target = $region33
    $region32: #{_forward.1} parent=1 // pred_region
      %41 = dma.done [#allocation3], 6272
    $region33: #{_forward.1} parent=1 // pred_fallthru
      _
    %v43 = vld [vmem:[%s0] sm:$0xff]
    %v44 = vld [vmem:[%s0 + $0x8] sm:$0xff]
    %v45 = vld [vmem:[%s0 + $0x10] sm:$0xff]
    %v46 = vld [vmem:[%s0 + $0x18] sm:$0xff]
    %v47 = vld [vmem:[%s0 + $0x20] sm:$0xff]
    %v48 = vld [vmem:[%s0 + $0x28] sm:$0xff]
    %v49 = vld [vmem:[%s0 + $0x30] sm:$0xff]
    %v50 = vpack.c.bf16 %v43, %v43
    %v51 = vpack.c.bf16 %v44, %v44
    %v52 = vpack.c.bf16 %v45, %v45
    %v53 = vpack.c.bf16 %v46, %v46
    %v54 = vpack.c.bf16 %v47, %v47
    %v55 = vpack.c.bf16 %v48, %v48
    %v56 = vpack.c.bf16 %v49, %v49
    %v57 = vld [vmem:[%s2] sm:$0x1]
    %v58 = vld [vmem:[%s4] sm:$0x1]
    %v59 = vld [vmem:[%s6] sm:$0x1]
    %v60 = vld [vmem:[#allocation2] sm:$0xf]
    %v61 = vld [vmem:[#allocation2 + $0x4] sm:$0xf]
    %v62 = vld [vmem:[#allocation2 + $0x8] sm:$0xf]
    %v63 = vld [vmem:[#allocation2 + $0xc] sm:$0xf]
    %v64 = vld [vmem:[#allocation2 + $0x10] sm:$0xf]
    %v65 = vld [vmem:[#allocation2 + $0x14] sm:$0xf]
    %v66 = vld [vmem:[#allocation2 + $0x18] sm:$0xf]
    %v67 = vld [vmem:[#allocation2 + $0x1c] sm:$0xf]
    %v68 = vld [vmem:[#allocation2 + $0x20] sm:$0xf]
    %v69 = vld [vmem:[#allocation2 + $0x24] sm:$0xf]
    %v70 = vld [vmem:[#allocation2 + $0x28] sm:$0xf]
    %v71 = vld [vmem:[#allocation2 + $0x2c] sm:$0xf]
    %v72 = vld [vmem:[#allocation2 + $0x30] sm:$0xf]
    %v73 = vld [vmem:[#allocation2 + $0x34] sm:$0xf]
    %v74 = vld [vmem:[#allocation2 + $0x38] sm:$0xf]
    %v75 = vld [vmem:[#allocation2 + $0x3c] sm:$0xf]
    %v76 = vld [vmem:[#allocation2 + $0x40] sm:$0xf]
    %v77 = vld [vmem:[#allocation2 + $0x44] sm:$0xf]
    %v78 = vld [vmem:[#allocation2 + $0x48] sm:$0xf]
    %v79 = vld [vmem:[#allocation2 + $0x4c] sm:$0xf]
    %v80 = vld [vmem:[#allocation2 + $0x50] sm:$0xf]
    %v81 = vld [vmem:[#allocation2 + $0x54] sm:$0xf]
    %v82 = vld [vmem:[#allocation2 + $0x58] sm:$0xf]
    %v83 = vld [vmem:[#allocation2 + $0x5c] sm:$0xf]
    %v84 = vld [vmem:[#allocation2 + $0x60] sm:$0xf]
    %v85 = vld [vmem:[#allocation2 + $0x64] sm:$0xf]
    %v86 = vld [vmem:[#allocation2 + $0x68] sm:$0xf]
    %v87 = vld [vmem:[#allocation2 + $0x6c] sm:$0xf]
    %v88 = vld [vmem:[#allocation2 + $0x70] sm:$0xf]
    %v89 = vld [vmem:[#allocation2 + $0x74] sm:$0xf]
    %v90 = vld [vmem:[#allocation2 + $0x78] sm:$0xf]
    %v91 = vld [vmem:[#allocation2 + $0x7c] sm:$0xf]
    %v92 = vld [vmem:[#allocation2 + $0x80] sm:$0xf]
    %v93 = vld [vmem:[#allocation2 + $0x84] sm:$0xf]
    %v94 = vld [vmem:[#allocation2 + $0x88] sm:$0xf]
    %v95 = vld [vmem:[#allocation2 + $0x8c] sm:$0xf]
    %v96 = vld [vmem:[#allocation2 + $0x90] sm:$0xf]
    %v97 = vld [vmem:[#allocation2 + $0x94] sm:$0xf]
    %v98 = vld [vmem:[#allocation2 + $0x98] sm:$0xf]
    %v99 = vld [vmem:[#allocation2 + $0x9c] sm:$0xf]
    %v100 = vld [vmem:[#allocation2 + $0xa0] sm:$0xf]
    %v101 = vld [vmem:[#allocation2 + $0xa4] sm:$0xf]
    %v102 = vld [vmem:[#allocation2 + $0xa8] sm:$0xf]
    %v103 = vld [vmem:[#allocation2 + $0xac] sm:$0xf]
    %v104 = vld [vmem:[#allocation2 + $0xb0] sm:$0xf]
    %v105 = vld [vmem:[#allocation2 + $0xb4] sm:$0xf]
    %v106 = vld [vmem:[#allocation2 + $0xb8] sm:$0xf]
    %v107 = vld [vmem:[#allocation2 + $0xbc] sm:$0xf]
    %v108 = vld [vmem:[#allocation2 + $0xc0] sm:$0xf]
    %v109 = vld [vmem:[#allocation2 + $0xc4] sm:$0xf]
    %v110 = vld [vmem:[#allocation2 + $0xc8] sm:$0xf]
    %v111 = vld [vmem:[#allocation2 + $0xcc] sm:$0xf]
    %v112 = vld [vmem:[#allocation2 + $0xd0] sm:$0xf]
    %v113 = vld [vmem:[#allocation2 + $0xd4] sm:$0xf]
    %v114 = vld [vmem:[#allocation2 + $0xd8] sm:$0xf]
    %v115 = vld [vmem:[#allocation2 + $0xdc] sm:$0xf]
    %v116 = vld [vmem:[#allocation2 + $0xe0] sm:$0xf]
    %v117 = vld [vmem:[#allocation2 + $0xe4] sm:$0xf]
    %v118 = vld [vmem:[#allocation2 + $0xe8] sm:$0xf]
    %v119 = vld [vmem:[#allocation2 + $0xec] sm:$0xf]
    %v120 = vld [vmem:[#allocation2 + $0xf0] sm:$0xf]
    %v121 = vld [vmem:[#allocation2 + $0xf4] sm:$0xf]
    %v122 = vld [vmem:[#allocation2 + $0xf8] sm:$0xf]
    %v123 = vld [vmem:[#allocation2 + $0xfc] sm:$0xf]
    %v124 = vld [vmem:[#allocation2 + $0x100] sm:$0xf]
    %v125 = vld [vmem:[#allocation2 + $0x104] sm:$0xf]
    %v126 = vld [vmem:[#allocation2 + $0x108] sm:$0xf]
    %v127 = vld [vmem:[#allocation2 + $0x10c] sm:$0xf]
    %v128 = vld [vmem:[#allocation2 + $0x110] sm:$0xf]
    %v129 = vld [vmem:[#allocation2 + $0x114] sm:$0xf]
    %v130 = vld [vmem:[#allocation2 + $0x118] sm:$0xf]
    %v131 = vld [vmem:[#allocation2 + $0x11c] sm:$0xf]
    %v132 = vld [vmem:[#allocation2 + $0x120] sm:$0xf]
    %v133 = vld [vmem:[#allocation2 + $0x124] sm:$0xf]
    %v134 = vld [vmem:[#allocation2 + $0x128] sm:$0xf]
    %v135 = vld [vmem:[#allocation2 + $0x12c] sm:$0xf]
    %v136 = vld [vmem:[#allocation2 + $0x130] sm:$0xf]
    %v137 = vld [vmem:[#allocation2 + $0x134] sm:$0xf]
    %v138 = vld [vmem:[#allocation2 + $0x138] sm:$0xf]
    %v139 = vld [vmem:[#allocation2 + $0x13c] sm:$0xf]
    %v140 = vld [vmem:[#allocation2 + $0x140] sm:$0xf]
    %v141 = vld [vmem:[#allocation2 + $0x144] sm:$0xf]
    %v142 = vld [vmem:[#allocation2 + $0x148] sm:$0xf]
    %v143 = vld [vmem:[#allocation2 + $0x14c] sm:$0xf]
    %v144 = vld [vmem:[#allocation2 + $0x150] sm:$0xf]
    %v145 = vld [vmem:[#allocation2 + $0x154] sm:$0xf]
    %v146 = vld [vmem:[#allocation2 + $0x158] sm:$0xf]
    %v147 = vld [vmem:[#allocation2 + $0x15c] sm:$0xf]
    %v148 = vld [vmem:[#allocation2 + $0x160] sm:$0xf]
    %v149 = vld [vmem:[#allocation2 + $0x164] sm:$0xf]
    %v150 = vld [vmem:[#allocation2 + $0x168] sm:$0xf]
    %v151 = vld [vmem:[#allocation2 + $0x16c] sm:$0xf]
    %v152 = vld [vmem:[#allocation2 + $0x170] sm:$0xf]
    %v153 = vld [vmem:[#allocation2 + $0x174] sm:$0xf]
    %v154 = vld [vmem:[#allocation2 + $0x178] sm:$0xf]
    %v155 = vld [vmem:[#allocation2 + $0x17c] sm:$0xf]
    %v156 = vld [vmem:[#allocation2 + $0x180] sm:$0xf]
    %v157 = vld [vmem:[#allocation2 + $0x184] sm:$0xf]
    %v159 = vperm.slane %v57, 0
    %v259 = vunpack.c.l.b16 %v60
    %v260 = vunpack.c.l.b16 %v61
    %v261 = vunpack.c.l.b16 %v62
    %v262 = vunpack.c.l.b16 %v63
    %v263 = vunpack.c.l.b16 %v64
    %v264 = vunpack.c.l.b16 %v65
    %v265 = vunpack.c.l.b16 %v66
    %v266 = vunpack.c.l.b16 %v67
    %v267 = vunpack.c.l.b16 %v68
    %v268 = vunpack.c.l.b16 %v69
    %v269 = vunpack.c.l.b16 %v70
    %v270 = vunpack.c.l.b16 %v71
    %v271 = vunpack.c.l.b16 %v72
    %v272 = vunpack.c.l.b16 %v73
    %v273 = vunpack.c.l.b16 %v74
    %v274 = vunpack.c.l.b16 %v75
    %v275 = vunpack.c.l.b16 %v76
    %v276 = vunpack.c.l.b16 %v77
    %v277 = vunpack.c.l.b16 %v78
    %v278 = vunpack.c.l.b16 %v79
    %v279 = vunpack.c.l.b16 %v80
    %v280 = vunpack.c.l.b16 %v81
    %v281 = vunpack.c.l.b16 %v82
    %v282 = vunpack.c.l.b16 %v83
    %v283 = vunpack.c.l.b16 %v84
    %v284 = vunpack.c.l.b16 %v85
    %v285 = vunpack.c.l.b16 %v86
    %v286 = vunpack.c.l.b16 %v87
    %v287 = vunpack.c.l.b16 %v88
    %v288 = vunpack.c.l.b16 %v89
    %v289 = vunpack.c.l.b16 %v90
    %v290 = vunpack.c.l.b16 %v91
    %v291 = vunpack.c.l.b16 %v92
    %v292 = vunpack.c.l.b16 %v93
    %v293 = vunpack.c.l.b16 %v94
    %v294 = vunpack.c.l.b16 %v95
    %v295 = vunpack.c.l.b16 %v96
    %v296 = vunpack.c.l.b16 %v97
    %v297 = vunpack.c.l.b16 %v98
    %v298 = vunpack.c.l.b16 %v99
    %v299 = vunpack.c.l.b16 %v100
    %v300 = vunpack.c.l.b16 %v101
    %v301 = vunpack.c.l.b16 %v102
    %v302 = vunpack.c.l.b16 %v103
    %v303 = vunpack.c.l.b16 %v104
    %v304 = vunpack.c.l.b16 %v105
    %v305 = vunpack.c.l.b16 %v106
    %v306 = vunpack.c.l.b16 %v107
    %v307 = vunpack.c.l.b16 %v108
    %v308 = vunpack.c.l.b16 %v109
    %v309 = vunpack.c.l.b16 %v110
    %v310 = vunpack.c.l.b16 %v111
    %v311 = vunpack.c.l.b16 %v112
    %v312 = vunpack.c.l.b16 %v113
    %v313 = vunpack.c.l.b16 %v114
    %v314 = vunpack.c.l.b16 %v115
    %v315 = vunpack.c.l.b16 %v116
    %v316 = vunpack.c.l.b16 %v117
    %v317 = vunpack.c.l.b16 %v118
    %v318 = vunpack.c.l.b16 %v119
    %v319 = vunpack.c.l.b16 %v120
    %v320 = vunpack.c.l.b16 %v121
    %v321 = vunpack.c.l.b16 %v122
    %v322 = vunpack.c.l.b16 %v123
    %v323 = vunpack.c.l.b16 %v124
    %v324 = vunpack.c.l.b16 %v125
    %v325 = vunpack.c.l.b16 %v126
    %v326 = vunpack.c.l.b16 %v127
    %v327 = vunpack.c.l.b16 %v128
    %v328 = vunpack.c.l.b16 %v129
    %v329 = vunpack.c.l.b16 %v130
    %v330 = vunpack.c.l.b16 %v131
    %v331 = vunpack.c.l.b16 %v132
    %v332 = vunpack.c.l.b16 %v133
    %v333 = vunpack.c.l.b16 %v134
    %v334 = vunpack.c.l.b16 %v135
    %v335 = vunpack.c.l.b16 %v136
    %v336 = vunpack.c.l.b16 %v137
    %v337 = vunpack.c.l.b16 %v138
    %v338 = vunpack.c.l.b16 %v139
    %v339 = vunpack.c.l.b16 %v140
    %v340 = vunpack.c.l.b16 %v141
    %v341 = vunpack.c.l.b16 %v142
    %v342 = vunpack.c.l.b16 %v143
    %v343 = vunpack.c.l.b16 %v144
    %v344 = vunpack.c.l.b16 %v145
    %v345 = vunpack.c.l.b16 %v146
    %v346 = vunpack.c.l.b16 %v147
    %v347 = vunpack.c.l.b16 %v148
    %v348 = vunpack.c.l.b16 %v149
    %v349 = vunpack.c.l.b16 %v150
    %v350 = vunpack.c.l.b16 %v151
    %v351 = vunpack.c.l.b16 %v152
    %v352 = vunpack.c.l.b16 %v153
    %v353 = vunpack.c.l.b16 %v154
    %v354 = vunpack.c.l.b16 %v155
    %v355 = vunpack.c.l.b16 %v156
    %v356 = vunpack.c.l.b16 %v157
    %v357 = vpack.c.b16 %v260, %v259
    %v358 = vpack.c.b16 %v262, %v261
    %v359 = vpack.c.b16 %v264, %v263
    %v360 = vpack.c.b16 %v266, %v265
    %v361 = vpack.c.b16 %v268, %v267
    %v362 = vpack.c.b16 %v270, %v269
    %v363 = vpack.c.b16 %v272, %v271
    %v364 = vpack.c.b16 %v274, %v273
    %v365 = vpack.c.b16 %v276, %v275
    %v366 = vpack.c.b16 %v278, %v277
    %v367 = vpack.c.b16 %v280, %v279
    %v368 = vpack.c.b16 %v282, %v281
    %v369 = vpack.c.b16 %v284, %v283
    %v370 = vpack.c.b16 %v286, %v285
    %v371 = vpack.c.b16 %v288, %v287
    %v372 = vpack.c.b16 %v290, %v289
    %v373 = vpack.c.b16 %v292, %v291
    %v374 = vpack.c.b16 %v294, %v293
    %v375 = vpack.c.b16 %v296, %v295
    %v376 = vpack.c.b16 %v298, %v297
    %v377 = vpack.c.b16 %v300, %v299
    %v378 = vpack.c.b16 %v302, %v301
    %v379 = vpack.c.b16 %v304, %v303
    %v380 = vpack.c.b16 %v306, %v305
    %v381 = vpack.c.b16 %v308, %v307
    %v382 = vpack.c.b16 %v310, %v309
    %v383 = vpack.c.b16 %v312, %v311
    %v384 = vpack.c.b16 %v314, %v313
    %v385 = vpack.c.b16 %v316, %v315
    %v386 = vpack.c.b16 %v318, %v317
    %v387 = vpack.c.b16 %v320, %v319
    %v388 = vpack.c.b16 %v322, %v321
    %v389 = vpack.c.b16 %v324, %v323
    %v390 = vpack.c.b16 %v326, %v325
    %v391 = vpack.c.b16 %v328, %v327
    %v392 = vpack.c.b16 %v330, %v329
    %v393 = vpack.c.b16 %v332, %v331
    %v394 = vpack.c.b16 %v334, %v333
    %v395 = vpack.c.b16 %v336, %v335
    %v396 = vpack.c.b16 %v338, %v337
    %v397 = vpack.c.b16 %v340, %v339
    %v398 = vpack.c.b16 %v342, %v341
    %v399 = vpack.c.b16 %v344, %v343
    %v400 = vpack.c.b16 %v346, %v345
    %v401 = vpack.c.b16 %v348, %v347
    %v402 = vpack.c.b16 %v350, %v349
    %v403 = vpack.c.b16 %v352, %v351
    %v404 = vpack.c.b16 %v354, %v353
    %v405 = vpack.c.b16 %v356, %v355
    %vm455 = vcmask 130048
    %v457 = vsel %vm455, %v56, 0
    %459 = vmatpush.bf16.msra.mxu0 %v364
    %460 = vmatpush.bf16.msra.mxu0 %v363
    %461 = vmatpush.bf16.msra.mxu0 %v362
    %462 = vmatpush.bf16.msra.mxu0 %v361
    %463 = vmatpush.bf16.msra.mxu0 %v360
    %464 = vmatpush.bf16.msra.mxu0 %v359
    %465 = vmatpush.bf16.msra.mxu0 %v358
    %466 = vmatpush.bf16.msra.mxu0 %v357
    %467 = vmatmul.bf16.gmra.mxu0 %v50
    %v468 = vpop.f32.mrf.mxu0
    %v469 = vadd.f32 %v159, %v468
    %v470 = vpop.f32.mrf.mxu0
    %471 = vdwg.mxu0
    %472 = vmatpush.bf16.msra.mxu0 %v372
    %473 = vmatpush.bf16.msra.mxu0 %v371
    %474 = vmatpush.bf16.msra.mxu0 %v370
    %475 = vmatpush.bf16.msra.mxu0 %v369
    %476 = vmatpush.bf16.msra.mxu0 %v368
    %477 = vmatpush.bf16.msra.mxu0 %v367
    %478 = vmatpush.bf16.msra.mxu0 %v366
    %479 = vmatpush.bf16.msra.mxu0 %v365
    %480 = vmatmul.bf16.gmra.mxu0 %v51
    %v481 = vpop.f32.mrf.mxu0
    %v482 = vadd.f32 %v469, %v481
    %v483 = vpop.f32.mrf.mxu0
    %484 = vdwg.mxu0
    %485 = vmatpush.bf16.msra.mxu0 %v380
    %486 = vmatpush.bf16.msra.mxu0 %v379
    %487 = vmatpush.bf16.msra.mxu0 %v378
    %488 = vmatpush.bf16.msra.mxu0 %v377
    %489 = vmatpush.bf16.msra.mxu0 %v376
    %490 = vmatpush.bf16.msra.mxu0 %v375
    %491 = vmatpush.bf16.msra.mxu0 %v374
    %492 = vmatpush.bf16.msra.mxu0 %v373
    %493 = vmatmul.bf16.gmra.mxu0 %v52
    %v494 = vpop.f32.mrf.mxu0
    %v495 = vadd.f32 %v482, %v494
    %v496 = vpop.f32.mrf.mxu0
    %497 = vdwg.mxu0
    %498 = vmatpush.bf16.msra.mxu0 %v388
    %499 = vmatpush.bf16.msra.mxu0 %v387
    %500 = vmatpush.bf16.msra.mxu0 %v386
    %501 = vmatpush.bf16.msra.mxu0 %v385
    %502 = vmatpush.bf16.msra.mxu0 %v384
    %503 = vmatpush.bf16.msra.mxu0 %v383
    %504 = vmatpush.bf16.msra.mxu0 %v382
    %505 = vmatpush.bf16.msra.mxu0 %v381
    %506 = vmatmul.bf16.gmra.mxu0 %v53
    %v507 = vpop.f32.mrf.mxu0
    %v508 = vadd.f32 %v495, %v507
    %v509 = vpop.f32.mrf.mxu0
    %510 = vdwg.mxu0
    %511 = vmatpush.bf16.msra.mxu0 %v396
    %512 = vmatpush.bf16.msra.mxu0 %v395
    %513 = vmatpush.bf16.msra.mxu0 %v394
    %514 = vmatpush.bf16.msra.mxu0 %v393
    %515 = vmatpush.bf16.msra.mxu0 %v392
    %516 = vmatpush.bf16.msra.mxu0 %v391
    %517 = vmatpush.bf16.msra.mxu0 %v390
    %518 = vmatpush.bf16.msra.mxu0 %v389
    %519 = vmatmul.bf16.gmra.mxu0 %v54
    %v520 = vpop.f32.mrf.mxu0
    %v521 = vadd.f32 %v508, %v520
    %v522 = vpop.f32.mrf.mxu0
    %523 = vdwg.mxu0
    %524 = vmatpush.bf16.msra.mxu0 %v404
    %525 = vmatpush.bf16.msra.mxu0 %v403
    %526 = vmatpush.bf16.msra.mxu0 %v402
    %527 = vmatpush.bf16.msra.mxu0 %v401
    %528 = vmatpush.bf16.msra.mxu0 %v400
    %529 = vmatpush.bf16.msra.mxu0 %v399
    %530 = vmatpush.bf16.msra.mxu0 %v398
    %531 = vmatpush.bf16.msra.mxu0 %v397
    %532 = vmatmul.bf16.gmra.mxu0 %v55
    %v533 = vpop.f32.mrf.mxu0
    %v534 = vadd.f32 %v521, %v533
    %v535 = vpop.f32.mrf.mxu0
    %536 = vdwg.mxu0
    %537 = vmatpush.bf16.msra.mxu0 0
    %538 = vmatpush.bf16.msra.mxu0 0
    %539 = vmatpush.bf16.msra.mxu0 0
    %540 = vmatpush.bf16.msra.mxu0 0
    %541 = vmatpush.bf16.msra.mxu0 0
    %542 = vmatpush.bf16.msra.mxu0 0
    %543 = vmatpush.bf16.msra.mxu0 0
    %544 = vmatpush.bf16.msra.mxu0 %v405
    %545 = vmatmul.bf16.gmra.mxu0 %v457
    %v546 = vpop.f32.mrf.mxu0
    %v547 = vadd.f32 %v534, %v546
    %v548 = vpop.f32.mrf.mxu0
    %549 = vdwg.mxu0
    %v550 = vtanh.pop %v547
    %v551 = vpack.c.bf16 %v550, %v550
    %v552 = vld [vmem:[%s3] sm:$0xf]
    %v553 = vld [vmem:[%s3 + $0x4] sm:$0xf]
    %v554 = vld [vmem:[%s3 + $0x8] sm:$0xf]
    %v555 = vld [vmem:[%s3 + $0xc] sm:$0xf]
    %v556 = vld [vmem:[%s3 + $0x10] sm:$0xf]
    %v557 = vld [vmem:[%s3 + $0x14] sm:$0xf]
    %v558 = vld [vmem:[%s3 + $0x18] sm:$0xf]
    %v559 = vld [vmem:[%s3 + $0x1c] sm:$0xf]
    %v560 = vld [vmem:[%s3 + $0x20] sm:$0xf]
    %v561 = vld [vmem:[%s3 + $0x24] sm:$0xf]
    %v562 = vld [vmem:[%s3 + $0x28] sm:$0xf]
    %v563 = vld [vmem:[%s3 + $0x2c] sm:$0xf]
    %v564 = vld [vmem:[%s3 + $0x30] sm:$0xf]
    %v565 = vld [vmem:[%s3 + $0x34] sm:$0xf]
    %v566 = vld [vmem:[%s3 + $0x38] sm:$0xf]
    %v567 = vld [vmem:[%s3 + $0x3c] sm:$0xf]
    %v569 = vperm.slane %v58, 0
    %v587 = vunpack.c.l.b16 %v552
    %v588 = vunpack.c.l.b16 %v553
    %v589 = vunpack.c.l.b16 %v554
    %v590 = vunpack.c.l.b16 %v555
    %v591 = vunpack.c.l.b16 %v556
    %v592 = vunpack.c.l.b16 %v557
    %v593 = vunpack.c.l.b16 %v558
    %v594 = vunpack.c.l.b16 %v559
    %v595 = vunpack.c.l.b16 %v560
    %v596 = vunpack.c.l.b16 %v561
    %v597 = vunpack.c.l.b16 %v562
    %v598 = vunpack.c.l.b16 %v563
    %v599 = vunpack.c.l.b16 %v564
    %v600 = vunpack.c.l.b16 %v565
    %v601 = vunpack.c.l.b16 %v566
    %v602 = vunpack.c.l.b16 %v567
    %v603 = vpack.c.b16 %v588, %v587
    %v604 = vpack.c.b16 %v590, %v589
    %v605 = vpack.c.b16 %v592, %v591
    %v606 = vpack.c.b16 %v594, %v593
    %v607 = vpack.c.b16 %v596, %v595
    %v608 = vpack.c.b16 %v598, %v597
    %v609 = vpack.c.b16 %v600, %v599
    %v610 = vpack.c.b16 %v602, %v601
    %619 = vmatpush.bf16.msra.mxu0 %v610
    %620 = vmatpush.bf16.msra.mxu0 %v609
    %621 = vmatpush.bf16.msra.mxu0 %v608
    %622 = vmatpush.bf16.msra.mxu0 %v607
    %623 = vmatpush.bf16.msra.mxu0 %v606
    %624 = vmatpush.bf16.msra.mxu0 %v605
    %625 = vmatpush.bf16.msra.mxu0 %v604
    %626 = vmatpush.bf16.msra.mxu0 %v603
    %627 = vmatmul.bf16.gmra.mxu0 %v551
    %v628 = vpop.f32.mrf.mxu0
    %v629 = vadd.f32 %v569, %v628
    %v630 = vpop.f32.mrf.mxu0
    %631 = vdwg.mxu0
    %v632 = vtanh.pop %v629
    %v633 = vpack.c.bf16 %v632, %v632
    %634 = vmatpush.bf16.msra.mxu0 %v610
    %635 = vmatpush.bf16.msra.mxu0 %v609
    %636 = vmatpush.bf16.msra.mxu0 %v608
    %637 = vmatpush.bf16.msra.mxu0 %v607
    %638 = vmatpush.bf16.msra.mxu0 %v606
    %639 = vmatpush.bf16.msra.mxu0 %v605
    %640 = vmatpush.bf16.msra.mxu0 %v604
    %641 = vmatpush.bf16.msra.mxu0 %v603
    %642 = vmatmul.bf16.gmra.mxu0 %v633
    %v643 = vpop.f32.mrf.mxu0
    %v644 = vadd.f32 %v569, %v643
    %v645 = vpop.f32.mrf.mxu0
    %646 = vdwg.mxu0
    %v647 = vtanh.pop %v644
    %v648 = vpack.c.bf16 %v647, %v647
    %v649 = vld [vmem:[%s5] sm:$0xf]
    %v650 = vld [vmem:[%s5 + $0x4] sm:$0xf]
    %v651 = vld [vmem:[%s5 + $0x8] sm:$0xf]
    %v652 = vld [vmem:[%s5 + $0xc] sm:$0xf]
    %v653 = vld [vmem:[%s5 + $0x10] sm:$0xf]
    %v654 = vld [vmem:[%s5 + $0x14] sm:$0xf]
    %v655 = vld [vmem:[%s5 + $0x18] sm:$0xf]
    %v656 = vld [vmem:[%s5 + $0x1c] sm:$0xf]
    %v657 = vld [vmem:[%s5 + $0x20] sm:$0xf]
    %v658 = vld [vmem:[%s5 + $0x24] sm:$0xf]
    %v659 = vld [vmem:[%s5 + $0x28] sm:$0xf]
    %v660 = vld [vmem:[%s5 + $0x2c] sm:$0xf]
    %v661 = vld [vmem:[%s5 + $0x30] sm:$0xf]
    %v662 = vld [vmem:[%s5 + $0x34] sm:$0xf]
    %v663 = vld [vmem:[%s5 + $0x38] sm:$0xf]
    %v664 = vld [vmem:[%s5 + $0x3c] sm:$0xf]
    %v666 = vperm.slane %v59, 0
    %v684 = vunpack.c.l.b16 %v649
    %v685 = vunpack.c.l.b16 %v650
    %v686 = vunpack.c.l.b16 %v651
    %v687 = vunpack.c.l.b16 %v652
    %v688 = vunpack.c.l.b16 %v653
    %v689 = vunpack.c.l.b16 %v654
    %v690 = vunpack.c.l.b16 %v655
    %v691 = vunpack.c.l.b16 %v656
    %v692 = vunpack.c.l.b16 %v657
    %v693 = vunpack.c.l.b16 %v658
    %v694 = vunpack.c.l.b16 %v659
    %v695 = vunpack.c.l.b16 %v660
    %v696 = vunpack.c.l.b16 %v661
    %v697 = vunpack.c.l.b16 %v662
    %v698 = vunpack.c.l.b16 %v663
    %v699 = vunpack.c.l.b16 %v664
    %v700 = vpack.c.b16 %v685, %v684
    %v701 = vpack.c.b16 %v687, %v686
    %v702 = vpack.c.b16 %v689, %v688
    %v703 = vpack.c.b16 %v691, %v690
    %v704 = vpack.c.b16 %v693, %v692
    %v705 = vpack.c.b16 %v695, %v694
    %v706 = vpack.c.b16 %v697, %v696
    %v707 = vpack.c.b16 %v699, %v698
    %716 = vmatpush.bf16.msra.mxu0 %v707
    %717 = vmatpush.bf16.msra.mxu0 %v706
    %718 = vmatpush.bf16.msra.mxu0 %v705
    %719 = vmatpush.bf16.msra.mxu0 %v704
    %720 = vmatpush.bf16.msra.mxu0 %v703
    %721 = vmatpush.bf16.msra.mxu0 %v702
    %722 = vmatpush.bf16.msra.mxu0 %v701
    %723 = vmatpush.bf16.msra.mxu0 %v700
    %724 = vmatmul.bf16.gmra.mxu0 %v648
    %v725 = vpop.f32.mrf.mxu0
    %v726 = vadd.f32 %v666, %v725
    %v727 = vpop.f32.mrf.mxu0
    %728 = vdwg.mxu0
    %729 = vmax.xlane.f32.xlu0 %v726
    %v730 = vpop.xlane.xlu0 %729
    %v731 = vsub.f32 %v726, %v730
    %v732 = vmul.f32 %v731, 1.442695
    %v733 = vpow.pop %v732
    %734 = vadd.xlane.f32.xlu0 %v733
    %v735 = vpop.xlane.xlu0 %734
    %v736 = vlog2.pop %v735
    %v737 = vmul.f32 %v736, 0.6931472
    %v738 = vsub.f32 %v731, %v737
    %739 = vst [vmem:[%s7] sm:$0xff] %v738
    // Predicated region
    $region34: #{_forward.1} parent=1 // pred_check
      _
    $region35: #{_forward.1} parent=1 // pred_check_branch
      %741 = sbr.rel (0) target = $region37
    $region36: #{_forward.1} parent=1 // pred_region
      _
    $region37: #{_forward.1} parent=1 // pred_fallthru
      _
    // Predicated region
    $region38: #{_forward.1} parent=1 // pred_check
      _
    $region39: #{_forward.1} parent=1 // pred_check_branch
      %743 = sbr.rel (0) target = $region41
    $region40: #{_forward.1} parent=1 // pred_region
      _
    $region41: #{_forward.1} parent=1 // pred_fallthru
      _
    %744 = vsyncpa [#allocation3], 1

</llo_original>
